<compile_context>
chip_gen: v7x
topology: tpu7x:2x2x1
jax: 0.10.0
libtpu: 0.0.40
codegen_flags: <defaults>
</compile_context>

<pallas_src>
import functools

import jax
import jax.numpy as jnp
from jax import lax
from jax.experimental import pallas as pl
from jax.experimental.pallas import tpu as pltpu


def _mh_attention_kernel(x_ref, w_ref, b_ref, o_ref,
                         h_ref, q_ref, k_ref, v_ref,
                         *, dim, tb, tq, n_pad, n_valid, n_q_tiles, unroll):
    layer = pl.program_id(1)
    last_layer = pl.num_programs(1) - 1

    # Layer 0: the batch tile of x arrived through the pipelined BlockSpec input (already
    # prefetched); just seed the carried hidden state with a VMEM->VMEM copy.
    @pl.when(layer == 0)
    def _():
        h_ref[...] = x_ref[...]

    # ---- QKV projection: (TB*N, D) @ (D, D) bf16 matmuls with f32 accumulation.  Weights are
    # stacked on a leading axis of 3, so the q/k/v split is leading-axis indexing (lane-aligned
    # for any D).  NOTE: the 1/sqrt(D) scale was folded into Wq / bq on the host.
    x2 = h_ref[...].reshape(tb * n_pad, dim)
    for t, dst in enumerate((q_ref, k_ref, v_ref)):
        proj = jnp.dot(x2, w_ref[t], preferred_element_type=jnp.float32) + b_ref[t]
        dst[...] = proj.reshape(tb, n_pad, dim).astype(jnp.bfloat16)

    need_mask = n_pad != n_valid
    if need_mask:
        key_idx = lax.broadcasted_iota(jnp.int32, (1, 1, n_pad), 2)
        key_mask = key_idx < n_valid

    # ---- Attention, tiled over the query axis (live intermediates are (TB, TQ, N_pad) only).
    def q_tile_body(i, carry):
        qs = pl.multiple_of(i * tq, tq)
        q_t = q_ref[:, pl.ds(qs, tq), :]                          # (TB, TQ, D) bf16
        s = jnp.einsum('bqd,bkd->bqk', q_t, k_ref[...],
                       preferred_element_type=jnp.float32)        # (TB, TQ, N_pad) f32
        if need_mask:
            s = jnp.where(key_mask, s, -1e30)                     # mask padded key columns
        m = jnp.max(s, axis=-1, keepdims=True)
        p = jnp.exp(s - m)
        denom = jnp.sum(p, axis=-1, keepdims=True)                # f32 row sums
        o_t = jnp.einsum('bqk,bkd->bqd', p.astype(jnp.bfloat16), v_ref[...],
                         preferred_element_type=jnp.float32)      # (TB, TQ, D) f32
        # Deferred softmax normalization on the small (TB, TQ, D) tile; EUP reciprocal.
        o_t = o_t * pl.reciprocal(denom, approx=True)

        @pl.when(layer < last_layer)
        def _():
            h_ref[:, pl.ds(qs, tq), :] = o_t.astype(jnp.bfloat16)

        @pl.when(layer == last_layer)
        def _():
            # Last layer: write each q-tile straight into the output block.
            o_ref[:, pl.ds(qs, tq), :] = o_t.astype(o_ref.dtype)

        return carry

    lax.fori_loop(0, n_q_tiles, q_tile_body, 0, unroll=unroll)


def _physical_vmem_bytes():
    try:
        info = pltpu.get_tpu_info()
        for attr in ("vmem_capacity_bytes", "vmem_bytes", "vmem_size_bytes"):
            v = getattr(info, attr, None)
            if v:
                return int(v)
    except Exception:
        pass
    return 64 * 1024 * 1024  # conservative fallback (v7x per-core physical VMEM)


def _footprint_bytes(tb, n_pad, d, tq, unroll):
    return (
        4 * tb * n_pad * d * 2                    # h / q / k / v scratch (bf16)
        + 2 * tb * n_pad * d * 2                  # double-buffered x input block (bf16)
        + 2 * tb * n_pad * d * 4                  # double-buffered output block (f32)
        + 2 * (3 * d * d * 2 + 3 * d * 4)         # double-buffered stacked weights + bias
        + 2 * max(unroll, 1) * tb * tq * n_pad * 4  # live score/prob tiles (f32)
    )


def mh_attention(x, wq, wk, wv, bq, bk, bv):
    """x: (B, N, D); w*: (depth, D, D); b*: (depth, 1, D). Returns (B, N, D) float32."""
    depth, D, _ = wq.shape
    B, N, _ = x.shape

    # ---- Query tiling / sequence padding (keep blocks (8,128)-friendly, lane-dense stores).
    if N % 128 == 0:
        N_pad, TQ = N, 128
    elif N < 128:
        N_pad = ((N + 7) // 8) * 8                # sublane alignment only for small N
        TQ = N_pad
    else:
        N_pad = ((N + 127) // 128) * 128
        TQ = 128
    n_q_tiles = N_pad // TQ
    unroll = min(n_q_tiles, 2)                    # cap unroll: bounds live (TQ, N) score tiles

    # ---- Per-generation VMEM budget and batch-tile (weight-amortization) selection.
    phys_vmem = _physical_vmem_bytes()
    budget = int(phys_vmem * 0.6)
    TB = 1
    for tb in range(1, min(B, 8) + 1):
        if B % tb == 0 and _footprint_bytes(tb, N_pad, D, TQ, unroll) <= budget:
            TB = tb
    footprint = _footprint_bytes(TB, N_pad, D, TQ, unroll)
    vmem_limit = int(min(max(2 * footprint, 32 * 1024 * 1024), int(phys_vmem * 0.75)))

    # ---- Host-side prep: fold 1/sqrt(D) into the Q projection, stack QKV weights on a
    # leading axis of 3, cast MXU operands to bf16 (halves weight + input DMA traffic).
    scale = float(D) ** -0.5
    w_qkv = jnp.stack([wq * scale, wk, wv], axis=1).astype(jnp.bfloat16)  # (depth, 3, D, D)
    b_qkv = jnp.stack([bq * scale, bk, bv], axis=1).astype(jnp.float32)   # (depth, 3, 1, D)

    x_bf = x.astype(jnp.bfloat16)
    if N_pad != N:
        x_bf = jnp.pad(x_bf, ((0, 0), (0, N_pad - N), (0, 0)))

    kernel = functools.partial(_mh_attention_kernel,
                               dim=D, tb=TB, tq=TQ, n_pad=N_pad, n_valid=N,
                               n_q_tiles=n_q_tiles, unroll=unroll)

    out = pl.pallas_call(
        kernel,
        out_shape=jax.ShapeDtypeStruct((B, N_pad, D), jnp.float32),
        grid_spec=pltpu.PrefetchScalarGridSpec(
            num_scalar_prefetch=0,
            grid=(B // TB, depth),
            in_specs=[
                pl.BlockSpec((TB, N_pad, D), lambda b, l: (b, 0, 0)),      # x (pipelined)
                pl.BlockSpec((None, 3, D, D), lambda b, l: (l, 0, 0, 0)),  # stacked W_qkv
                pl.BlockSpec((None, 3, 1, D), lambda b, l: (l, 0, 0, 0)),  # stacked b_qkv
            ],
            out_specs=pl.BlockSpec((TB, N_pad, D), lambda b, l: (b, 0, 0)),
            scratch_shapes=[
                pltpu.VMEM((TB, N_pad, D), jnp.bfloat16),   # carried hidden state (bf16)
                pltpu.VMEM((TB, N_pad, D), jnp.bfloat16),   # q
                pltpu.VMEM((TB, N_pad, D), jnp.bfloat16),   # k
                pltpu.VMEM((TB, N_pad, D), jnp.bfloat16),   # v
            ],
        ),
        compiler_params=pltpu.CompilerParams(
            dimension_semantics=("parallel", "arbitrary"),
            vmem_limit_bytes=vmem_limit,
        ),
    )(x_bf, w_qkv, b_qkv)

    # TODO(synk): for very large N*D on v7x, switch to a flash-style streamed K/V inner loop
    # so the resident footprint does not scale with N.
    return out[:, :N, :] if N_pad != N else out


def mh_attention_ref(x, wq, wk, wv, bq, bk, bv):
    """Pure-JAX f32 reference of the same stacked self-attention."""
    depth = wq.shape[0]
    scale = x.shape[-1] ** -0.5
    for l in range(depth):
        q = jnp.einsum('bnd,de->bne', x, wq[l]) + bq[l]
        k = jnp.einsum('bnd,de->bne', x, wk[l]) + bk[l]
        v = jnp.einsum('bnd,de->bne', x, wv[l]) + bv[l]
        s = jnp.einsum('bqd,bkd->bqk', q, k) * scale
        p = jax.nn.softmax(s, axis=-1)
        x = jnp.einsum('bqk,bkd->bqd', p, v)
    return x


if __name__ == "__main__":
    B, N, D, depth = 2, 8, 32, 2

    key = jax.random.PRNGKey(0)
    kx, kq, kk, kv, kbq, kbk, kbv = jax.random.split(key, 7)

    x = jax.random.normal(kx, (B, N, D), dtype=jnp.float32)
    # Deterministic synthetic parameters (shapes from nn.Linear(dim, dim) x3 per layer).
    wq = 0.1 * jax.random.normal(kq, (depth, D, D), dtype=jnp.float32)
    wk = 0.1 * jax.random.normal(kk, (depth, D, D), dtype=jnp.float32)
    wv = 0.1 * jax.random.normal(kv, (depth, D, D), dtype=jnp.float32)
    bq = 0.1 * jax.random.normal(kbq, (depth, 1, D), dtype=jnp.float32)
    bk = 0.1 * jax.random.normal(kbk, (depth, 1, D), dtype=jnp.float32)
    bv = 0.1 * jax.random.normal(kbv, (depth, 1, D), dtype=jnp.float32)

    out = mh_attention(x, wq, wk, wv, bq, bk, bv)
    out = jax.block_until_ready(out)

    ref = mh_attention_ref(x, wq, wk, wv, bq, bk, bv)
    assert out.shape == (B, N, D)
    # bf16 MXU operands + approx reciprocal -> tolerance loosened vs the f32 reference.
    assert jnp.allclose(out, ref, atol=3e-2, rtol=3e-2), "mismatch vs reference"

    print("KERNEL_OK")
</pallas_src>

<mosaic_0001>
module attributes {stable_mosaic.version = 11 : i64} {
  func.func @_mh_attention_kernel(%arg0: i32, %arg1: i32, %arg2: memref<2x8x32xbf16, #tpu.memory_space<vmem>>, %arg3: memref<1x3x32x32xbf16, #tpu.memory_space<vmem>>, %arg4: memref<1x3x1x32xf32, #tpu.memory_space<vmem>>, %arg5: memref<2x8x32xf32, #tpu.memory_space<vmem>>, %arg6: memref<2x8x32xbf16, #tpu.memory_space<vmem>>, %arg7: memref<2x8x32xbf16, #tpu.memory_space<vmem>>, %arg8: memref<2x8x32xbf16, #tpu.memory_space<vmem>>, %arg9: memref<2x8x32xbf16, #tpu.memory_space<vmem>>) attributes {dimension_semantics = [#tpu.dimension_semantics<parallel>, #tpu.dimension_semantics<arbitrary>], iteration_bounds = array<i64: 1, 2>, scalar_prefetch = 0 : i64, scratch_operands = 4 : i64, tpu.core_type = #tpu.core_type<tc>, window_params = [{transform_indices = @transform_0, window_bounds = array<i64: 2, 8, 32>}, {transform_indices = @transform_1, window_bounds = array<i64: 1, 3, 32, 32>}, {transform_indices = @transform_2, window_bounds = array<i64: 1, 3, 1, 32>}, {transform_indices = @transform_3, window_bounds = array<i64: 2, 8, 32>}]} {
    %c0_i32 = arith.constant 0 : i32
    %0 = arith.cmpi eq, %arg1, %c0_i32 : i32
    %1 = arith.extui %0 : i1 to i32
    %c0_i32_0 = arith.constant 0 : i32
    %2 = arith.cmpi ne, %1, %c0_i32_0 : i32
    scf.if %2 {
      %c0_53 = arith.constant 0 : index
      %c0_54 = arith.constant 0 : index
      %c0_55 = arith.constant 0 : index
      %60 = vector.load %arg2[%c0_53, %c0_54, %c0_55] : memref<2x8x32xbf16, #tpu.memory_space<vmem>>, vector<2x8x32xbf16>
      %c0_56 = arith.constant 0 : index
      %c0_57 = arith.constant 0 : index
      %c0_58 = arith.constant 0 : index
      %61 = vector.load %arg6[%c0_56, %c0_57, %c0_58] : memref<2x8x32xbf16, #tpu.memory_space<vmem>>, vector<2x8x32xbf16>
      tpu.vector_store %arg6[%c0_56, %c0_57, %c0_58], %60 {strides = array<i32>} : memref<2x8x32xbf16, #tpu.memory_space<vmem>>, vector<2x8x32xbf16>,
    } else {
    }
    %c0 = arith.constant 0 : index
    %c0_1 = arith.constant 0 : index
    %c0_2 = arith.constant 0 : index
    %3 = vector.load %arg6[%c0, %c0_1, %c0_2] : memref<2x8x32xbf16, #tpu.memory_space<vmem>>, vector<2x8x32xbf16>
    %4 = vector.shape_cast %3 : vector<2x8x32xbf16> to vector<16x32xbf16>
    %c0_3 = arith.constant 0 : index
    %c0_4 = arith.constant 0 : index
    %c0_5 = arith.constant 0 : index
    %c0_6 = arith.constant 0 : index
    %5 = vector.load %arg3[%c0_3, %c0_4, %c0_5, %c0_6] : memref<1x3x32x32xbf16, #tpu.memory_space<vmem>>, vector<1x1x32x32xbf16>
    %6 = vector.shape_cast %5 : vector<1x1x32x32xbf16> to vector<32x32xbf16>
    %cst = arith.constant dense<0.000000e+00> : vector<16x32xf32>
    %7 = tpu.matmul %4, %6, %cst {dimension_numbers = #tpu.dot_dimension_numbers<[1], [0], [0], [1], [0, 0, 1, 1], [], []>} : vector<16x32xbf16>, vector<32x32xbf16>, vector<16x32xf32> -> vector<16x32xf32>
    %c0_7 = arith.constant 0 : index
    %c0_8 = arith.constant 0 : index
    %c0_9 = arith.constant 0 : index
    %c0_10 = arith.constant 0 : index
    %8 = vector.load %arg4[%c0_7, %c0_8, %c0_9, %c0_10] : memref<1x3x1x32xf32, #tpu.memory_space<vmem>>, vector<1x1x1x32xf32>
    %9 = vector.shape_cast %8 : vector<1x1x1x32xf32> to vector<1x32xf32>
    %10 = vector.broadcast %9 : vector<1x32xf32> to vector<16x32xf32>
    %11 = arith.addf %7, %10 : vector<16x32xf32>
    %12 = vector.shape_cast %11 : vector<16x32xf32> to vector<2x8x32xf32>
    %13 = arith.truncf %12 : vector<2x8x32xf32> to vector<2x8x32xbf16>
    %c0_11 = arith.constant 0 : index
    %c0_12 = arith.constant 0 : index
    %c0_13 = arith.constant 0 : index
    %14 = vector.load %arg7[%c0_11, %c0_12, %c0_13] : memref<2x8x32xbf16, #tpu.memory_space<vmem>>, vector<2x8x32xbf16>
    tpu.vector_store %arg7[%c0_11, %c0_12, %c0_13], %13 {strides = array<i32>} : memref<2x8x32xbf16, #tpu.memory_space<vmem>>, vector<2x8x32xbf16>,
    %c0_14 = arith.constant 0 : index
    %c1 = arith.constant 1 : index
    %c0_15 = arith.constant 0 : index
    %c0_16 = arith.constant 0 : index
    %15 = vector.load %arg3[%c0_14, %c1, %c0_15, %c0_16] : memref<1x3x32x32xbf16, #tpu.memory_space<vmem>>, vector<1x1x32x32xbf16>
    %16 = vector.shape_cast %15 : vector<1x1x32x32xbf16> to vector<32x32xbf16>
    %cst_17 = arith.constant dense<0.000000e+00> : vector<16x32xf32>
    %17 = tpu.matmul %4, %16, %cst_17 {dimension_numbers = #tpu.dot_dimension_numbers<[1], [0], [0], [1], [0, 0, 1, 1], [], []>} : vector<16x32xbf16>, vector<32x32xbf16>, vector<16x32xf32> -> vector<16x32xf32>
    %c0_18 = arith.constant 0 : index
    %c1_19 = arith.constant 1 : index
    %c0_20 = arith.constant 0 : index
    %c0_21 = arith.constant 0 : index
    %18 = vector.load %arg4[%c0_18, %c1_19, %c0_20, %c0_21] : memref<1x3x1x32xf32, #tpu.memory_space<vmem>>, vector<1x1x1x32xf32>
    %19 = vector.shape_cast %18 : vector<1x1x1x32xf32> to vector<1x32xf32>
    %20 = vector.broadcast %19 : vector<1x32xf32> to vector<16x32xf32>
    %21 = arith.addf %17, %20 : vector<16x32xf32>
    %22 = vector.shape_cast %21 : vector<16x32xf32> to vector<2x8x32xf32>
    %23 = arith.truncf %22 : vector<2x8x32xf32> to vector<2x8x32xbf16>
    %c0_22 = arith.constant 0 : index
    %c0_23 = arith.constant 0 : index
    %c0_24 = arith.constant 0 : index
    %24 = vector.load %arg8[%c0_22, %c0_23, %c0_24] : memref<2x8x32xbf16, #tpu.memory_space<vmem>>, vector<2x8x32xbf16>
    tpu.vector_store %arg8[%c0_22, %c0_23, %c0_24], %23 {strides = array<i32>} : memref<2x8x32xbf16, #tpu.memory_space<vmem>>, vector<2x8x32xbf16>,
    %c0_25 = arith.constant 0 : index
    %c2 = arith.constant 2 : index
    %c0_26 = arith.constant 0 : index
    %c0_27 = arith.constant 0 : index
    %25 = vector.load %arg3[%c0_25, %c2, %c0_26, %c0_27] : memref<1x3x32x32xbf16, #tpu.memory_space<vmem>>, vector<1x1x32x32xbf16>
    %26 = vector.shape_cast %25 : vector<1x1x32x32xbf16> to vector<32x32xbf16>
    %cst_28 = arith.constant dense<0.000000e+00> : vector<16x32xf32>
    %27 = tpu.matmul %4, %26, %cst_28 {dimension_numbers = #tpu.dot_dimension_numbers<[1], [0], [0], [1], [0, 0, 1, 1], [], []>} : vector<16x32xbf16>, vector<32x32xbf16>, vector<16x32xf32> -> vector<16x32xf32>
    %c0_29 = arith.constant 0 : index
    %c2_30 = arith.constant 2 : index
    %c0_31 = arith.constant 0 : index
    %c0_32 = arith.constant 0 : index
    %28 = vector.load %arg4[%c0_29, %c2_30, %c0_31, %c0_32] : memref<1x3x1x32xf32, #tpu.memory_space<vmem>>, vector<1x1x1x32xf32>
    %29 = vector.shape_cast %28 : vector<1x1x1x32xf32> to vector<1x32xf32>
    %30 = vector.broadcast %29 : vector<1x32xf32> to vector<16x32xf32>
    %31 = arith.addf %27, %30 : vector<16x32xf32>
    %32 = vector.shape_cast %31 : vector<16x32xf32> to vector<2x8x32xf32>
    %33 = arith.truncf %32 : vector<2x8x32xf32> to vector<2x8x32xbf16>
    %c0_33 = arith.constant 0 : index
    %c0_34 = arith.constant 0 : index
    %c0_35 = arith.constant 0 : index
    %34 = vector.load %arg9[%c0_33, %c0_34, %c0_35] : memref<2x8x32xbf16, #tpu.memory_space<vmem>>, vector<2x8x32xbf16>
    tpu.vector_store %arg9[%c0_33, %c0_34, %c0_35], %33 {strides = array<i32>} : memref<2x8x32xbf16, #tpu.memory_space<vmem>>, vector<2x8x32xbf16>,
    %c0_i32_36 = arith.constant 0 : i32
    %c8_i32 = arith.constant 8 : i32
    %35 = arith.muli %c0_i32_36, %c8_i32 : i32
    %36 = tpu.assume_multiple %35, 8 : i32
    %c0_37 = arith.constant 0 : index
    %37 = arith.index_cast %36 : i32 to index
    %c0_38 = arith.constant 0 : index
    %38 = vector.load %arg7[%c0_37, %37, %c0_38] : memref<2x8x32xbf16, #tpu.memory_space<vmem>>, vector<2x8x32xbf16>
    %c0_39 = arith.constant 0 : index
    %c0_40 = arith.constant 0 : index
    %c0_41 = arith.constant 0 : index
    %39 = vector.load %arg8[%c0_39, %c0_40, %c0_41] : memref<2x8x32xbf16, #tpu.memory_space<vmem>>, vector<2x8x32xbf16>
    "tpu.trace_start"() <{level = 10 : i32, message = "bqd,bkd->bqk"}> : () -> ()
    %cst_42 = arith.constant dense<0.000000e+00> : vector<2x8x8xf32>
    %40 = tpu.matmul %38, %39, %cst_42 {dimension_numbers = #tpu.dot_dimension_numbers<[2], [2], [1], [1], [0, 0, 0, 1, 1, 1], [0], [0]>} : vector<2x8x32xbf16>, vector<2x8x32xbf16>, vector<2x8x8xf32> -> vector<2x8x8xf32>
    "tpu.trace_stop"() : () -> ()
    %cst_43 = arith.constant dense<0xFF800000> : vector<2x8xf32>
    %41 = vector.multi_reduction <maximumf>, %40, %cst_43 [2] : vector<2x8x8xf32> to vector<2x8xf32>
    %42 = vector.shape_cast %41 : vector<2x8xf32> to vector<2x8x1xf32>
    %43 = vector.broadcast %42 : vector<2x8x1xf32> to vector<2x8x8xf32>
    %44 = arith.subf %40, %43 : vector<2x8x8xf32>
    %45 = math.exp %44 : vector<2x8x8xf32>
    %cst_44 = arith.constant dense<0.000000e+00> : vector<2x8xf32>
    %46 = vector.multi_reduction <add>, %45, %cst_44 [2] : vector<2x8x8xf32> to vector<2x8xf32>
    %47 = vector.shape_cast %46 : vector<2x8xf32> to vector<2x8x1xf32>
    %48 = arith.truncf %45 : vector<2x8x8xf32> to vector<2x8x8xbf16>
    %c0_45 = arith.constant 0 : index
    %c0_46 = arith.constant 0 : index
    %c0_47 = arith.constant 0 : index
    %49 = vector.load %arg9[%c0_45, %c0_46, %c0_47] : memref<2x8x32xbf16, #tpu.memory_space<vmem>>, vector<2x8x32xbf16>
    "tpu.trace_start"() <{level = 10 : i32, message = "bqk,bkd->bqd"}> : () -> ()
    %cst_48 = arith.constant dense<0.000000e+00> : vector<2x8x32xf32>
    %50 = tpu.matmul %48, %49, %cst_48 {dimension_numbers = #tpu.dot_dimension_numbers<[2], [1], [1], [2], [0, 0, 0, 1, 1, 2], [0], [0]>} : vector<2x8x8xbf16>, vector<2x8x32xbf16>, vector<2x8x32xf32> -> vector<2x8x32xf32>
    "tpu.trace_stop"() : () -> ()
    %51 = tpu.reciprocal %47 {approx = true} : vector<2x8x1xf32> -> vector<2x8x1xf32>
    %52 = vector.broadcast %51 : vector<2x8x1xf32> to vector<2x8x32xf32>
    %53 = arith.mulf %50, %52 : vector<2x8x32xf32>
    %c1_i32 = arith.constant 1 : i32
    %54 = arith.cmpi slt, %arg1, %c1_i32 : i32
    %55 = arith.extui %54 : i1 to i32
    %c0_i32_49 = arith.constant 0 : i32
    %56 = arith.cmpi ne, %55, %c0_i32_49 : i32
    scf.if %56 {
      %60 = arith.truncf %53 : vector<2x8x32xf32> to vector<2x8x32xbf16>
      %c0_53 = arith.constant 0 : index
      %61 = arith.index_cast %36 : i32 to index
      %c0_54 = arith.constant 0 : index
      %62 = vector.load %arg6[%c0_53, %61, %c0_54] : memref<2x8x32xbf16, #tpu.memory_space<vmem>>, vector<2x8x32xbf16>
      tpu.vector_store %arg6[%c0_53, %61, %c0_54], %60 {strides = array<i32>} : memref<2x8x32xbf16, #tpu.memory_space<vmem>>, vector<2x8x32xbf16>,
    } else {
    }
    %c1_i32_50 = arith.constant 1 : i32
    %57 = arith.cmpi eq, %arg1, %c1_i32_50 : i32
    %58 = arith.extui %57 : i1 to i32
    %c0_i32_51 = arith.constant 0 : i32
    %59 = arith.cmpi ne, %58, %c0_i32_51 : i32
    scf.if %59 {
      %c0_53 = arith.constant 0 : index
      %60 = arith.index_cast %36 : i32 to index
      %c0_54 = arith.constant 0 : index
      %61 = vector.load %arg5[%c0_53, %60, %c0_54] : memref<2x8x32xf32, #tpu.memory_space<vmem>>, vector<2x8x32xf32>
      tpu.vector_store %arg5[%c0_53, %60, %c0_54], %53 {strides = array<i32>} : memref<2x8x32xf32, #tpu.memory_space<vmem>>, vector<2x8x32xf32>,
    } else {
    }
    %c1_i32_52 = arith.constant 1 : i32
    return
  }
  func.func @transform_0(%arg0: i32, %arg1: i32) -> (i32, i32, i32) {
    %c0_i32 = arith.constant 0 : i32
    %c0_i32_0 = arith.constant 0 : i32
    %c0_i32_1 = arith.constant 0 : i32
    return %arg0, %c0_i32, %c0_i32_0 : i32, i32, i32
  }
  func.func @transform_1(%arg0: i32, %arg1: i32) -> (i32, i32, i32, i32) {
    %c0_i32 = arith.constant 0 : i32
    %c0_i32_0 = arith.constant 0 : i32
    %c0_i32_1 = arith.constant 0 : i32
    %c0_i32_2 = arith.constant 0 : i32
    return %arg1, %c0_i32, %c0_i32_0, %c0_i32_1 : i32, i32, i32, i32
  }
  func.func @transform_2(%arg0: i32, %arg1: i32) -> (i32, i32, i32, i32) {
    %c0_i32 = arith.constant 0 : i32
    %c0_i32_0 = arith.constant 0 : i32
    %c0_i32_1 = arith.constant 0 : i32
    %c0_i32_2 = arith.constant 0 : i32
    return %arg1, %c0_i32, %c0_i32_0, %c0_i32_1 : i32, i32, i32, i32
  }
  func.func @transform_3(%arg0: i32, %arg1: i32) -> (i32, i32, i32) {
    %c0_i32 = arith.constant 0 : i32
    %c0_i32_0 = arith.constant 0 : i32
    %c0_i32_1 = arith.constant 0 : i32
    return %arg0, %c0_i32, %c0_i32_0 : i32, i32, i32
  }
}

</mosaic_0001>

<llo_original>
// kernel: tpu_custom_call.1
$region0: #{tpu_custom_call.1}
  #allocation0 [shape = 'u32[]', space=smem, size = 0x4, offset = 0x4, fixed_abs, tag = 'smem constant byte address 0x4 - core index']
  #allocation1 [shape = 'u32[144,128]{1,0:T(1,128)}', space=vmem, size = 0x12000, scoped, tag = 'internal scratch']
  #allocation2 [shape = 'bf16[2,8,32]{2,1,0:T(8,128)(2,1)}', space=vmem, size = 0x1000, scoped, tag = 'scratch operand']
  #allocation3 [shape = 'bf16[2,8,32]{2,1,0:T(8,128)(2,1)}', space=vmem, size = 0x1000, scoped, tag = 'scratch operand']
  #allocation4 [shape = 'bf16[2,8,32]{2,1,0:T(8,128)(2,1)}', space=vmem, size = 0x1000, scoped, tag = 'scratch operand']
  #allocation5 [shape = 'bf16[2,8,32]{2,1,0:T(8,128)(2,1)}', space=vmem, size = 0x1000, scoped, tag = 'scratch operand']
  %s0 = inlined_call_operand.hbm [shape: bf16[2,8,32], index: 0, kind: input, shape index: {}]
  %s1 = inlined_call_operand.hbm [shape: bf16[2,3,32,32], index: 1, kind: input, shape index: {}]
  %s2 = inlined_call_operand.vmem [shape: f32[2,3,1,32], index: 2, kind: input, shape index: {}]
  %s3 = inlined_call_operand.hbm [shape: f32[2,8,32], index: 3, kind: output, shape index: {}]
  %s4 = sld [smem:[#allocation0]]
  $region65: #{tpu_custom_call.1} parent=0
    _
  %s6 = ssub.s32 1, %s4
  %s7 = scalar_select 0, %s6, %s4
  $region1: #{tpu_custom_call.1} parent=0
    #allocation6 [shape = 'u8[4096]{0}', space=vmem, size = 0x1000, scoped, tag = 'input window, operand 0, single buffered']
    #allocation7 [shape = 's32[2]{0}', space=sflag, size = 0x8, scoped, tag = 'scoped memory for tpu_custom_call.1']
    #allocation8 [shape = 's32[2]{0}', space=sflag, size = 0x8, scoped, tag = 'scoped memory for tpu_custom_call.1']
    #allocation9 [shape = 'u8[49152]{0}', space=vmem, size = 0xc000, scoped, tag = 'input window, operand 1']
    #allocation10 [shape = 's32[2]{0}', space=sflag, size = 0x8, scoped, tag = 'scoped memory for tpu_custom_call.1']
    #allocation11 [shape = 'u8[8192]{0}', space=vmem, size = 0x2000, scoped, tag = 'output window, operand 0, single buffered']
    %8 = vsyncpa [#allocation7], 0
    %9 = vsyncpa [#allocation10], 0
    %s10 = scalar_lea.sflag [#allocation10], 1
    %11 = vsyncpa %s10, 0
    %12 = vsyncpa [#allocation8], 0
    loop: start=0, step=1, limit=4
    $region2: #{tpu_custom_call.1} parent=1 // loop_pre_header
      _
    $region3: #{tpu_custom_call.1} parent=1 // loop_header
      %s14 = sphi 0, %s18
      %p15 = scmp.ge.s32.totalorder %s14, 4
      %s21 = sphi 0, %s33
      %s22 = sphi 0, %s29
      %s23 = sphi 0, %s21
      %s24 = sphi 0, %s22
      %s25 = sphi 0, %s23
      %s26 = sphi 0, %s24
      %s36 = sphi 0, %s38
      %s39 = sphi 0, %s36
      %s40 = sphi 0, %s39
      %s56 = sphi 0, %s40
      %s62 = sphi 0, %s64
      %s65 = sphi 0, %s62
      %s66 = sphi 0, %s65
      %s82 = sphi 0, %s66
      %s88 = sphi 0, %s90
      %s91 = sphi 0, %s88
      %s92 = sphi 0, %s91
      %s108 = sphi 0, %s92
      %s114 = sphi 0, %s116
      %s117 = sphi 0, %s114
      %s118 = sphi 0, %s117
      %s134 = sphi 0, %s118
    $region4: #{tpu_custom_call.1} parent=1 // loop_header_branch
      %17 = sbr.rel (%p15) target = $region8
    $region5: #{tpu_custom_call.1} parent=1 // loop_body
      %s19 = ssub.s32 %s14, 1
      %s20 = ssub.s32 %s14, 2
      %s27 = sadd.s32 1, %s22
      %p28 = scmp.ge.s32.totalorder %s27, 2
      %s29 = scalar_select %p28, 0, %s27
      %s30 = sadd.s32 1, %s21
      %s31 = scalar_select %p28, %s30, %s21
      %p32 = scmp.ge.s32.totalorder %s31, 1
      %s33 = scalar_select %p32, 0, %s31
      %s34 = ssub.s32 %s21, %s33
      %p35 = scmp.eq.s32.totalorder %s34, 0
      %s37 = sadd.s32 %s36, 1
      %s38 = scalar_select %p35, %s36, %s37
      %p41 = pneg %p35
      %p42 = scmp.eq.s32.totalorder %s14, 1
      %p43 = por %p41, %p42
      %p44 = scmp.ne.s32.totalorder %s36, %s39
      %p45 = scmp.eq.s32.totalorder %s14, 0
      %p46 = por %p44, %p45
      %p47 = scmp.ne.s32.totalorder %s36, %s39
      %p48 = scmp.eq.s32.totalorder %s19, 1
      %p49 = por %p47, %p48
      %p50 = scmp.ne.s32.totalorder %s39, %s40
      %p51 = scmp.eq.s32.totalorder %s19, 0
      %p52 = por %p50, %p51
      %p53 = scmp.ne.s32.totalorder %s39, %s40
      %p54 = scmp.eq.s32.totalorder %s20, 1
      %p55 = por %p53, %p54
      %p57 = scmp.ne.s32.totalorder %s40, %s56
      %p58 = scmp.eq.s32.totalorder %s20, 0
      %p59 = por %p57, %p58
      %s60 = ssub.s32 %s22, %s29
      %p61 = scmp.eq.s32.totalorder %s60, 0
      %s63 = sadd.s32 %s62, 1
      %s64 = scalar_select %p61, %s62, %s63
      %p67 = pneg %p61
      %p68 = scmp.eq.s32.totalorder %s14, 1
      %p69 = por %p67, %p68
      %p70 = scmp.ne.s32.totalorder %s62, %s65
      %p71 = scmp.eq.s32.totalorder %s14, 0
      %p72 = por %p70, %p71
      %p73 = scmp.ne.s32.totalorder %s62, %s65
      %p74 = scmp.eq.s32.totalorder %s19, 1
      %p75 = por %p73, %p74
      %p76 = scmp.ne.s32.totalorder %s65, %s66
      %p77 = scmp.eq.s32.totalorder %s19, 0
      %p78 = por %p76, %p77
      %p79 = scmp.ne.s32.totalorder %s65, %s66
      %p80 = scmp.eq.s32.totalorder %s20, 1
      %p81 = por %p79, %p80
      %p83 = scmp.ne.s32.totalorder %s66, %s82
      %p84 = scmp.eq.s32.totalorder %s20, 0
      %p85 = por %p83, %p84
      %s86 = ssub.s32 %s22, %s29
      %p87 = scmp.eq.s32.totalorder %s86, 0
      %s89 = sadd.s32 %s88, 1
      %s90 = scalar_select %p87, %s88, %s89
      %p93 = pneg %p87
      %p94 = scmp.eq.s32.totalorder %s14, 1
      %p95 = por %p93, %p94
      %p96 = scmp.ne.s32.totalorder %s88, %s91
      %p97 = scmp.eq.s32.totalorder %s14, 0
      %p98 = por %p96, %p97
      %p99 = scmp.ne.s32.totalorder %s88, %s91
      %p100 = scmp.eq.s32.totalorder %s19, 1
      %p101 = por %p99, %p100
      %p102 = scmp.ne.s32.totalorder %s91, %s92
      %p103 = scmp.eq.s32.totalorder %s19, 0
      %p104 = por %p102, %p103
      %p105 = scmp.ne.s32.totalorder %s91, %s92
      %p106 = scmp.eq.s32.totalorder %s20, 1
      %p107 = por %p105, %p106
      %p109 = scmp.ne.s32.totalorder %s92, %s108
      %p110 = scmp.eq.s32.totalorder %s20, 0
      %p111 = por %p109, %p110
      %s112 = ssub.s32 %s21, %s33
      %p113 = scmp.eq.s32.totalorder %s112, 0
      %s115 = sadd.s32 %s114, 1
      %s116 = scalar_select %p113, %s114, %s115
      %p119 = pneg %p113
      %p120 = scmp.eq.s32.totalorder %s14, 1
      %p121 = por %p119, %p120
      %p122 = scmp.ne.s32.totalorder %s114, %s117
      %p123 = scmp.eq.s32.totalorder %s14, 0
      %p124 = por %p122, %p123
      %p125 = scmp.ne.s32.totalorder %s114, %s117
      %p126 = scmp.eq.s32.totalorder %s19, 1
      %p127 = por %p125, %p126
      %p128 = scmp.ne.s32.totalorder %s117, %s118
      %p129 = scmp.eq.s32.totalorder %s19, 0
      %p130 = por %p128, %p129
      %p131 = scmp.ne.s32.totalorder %s117, %s118
      %p132 = scmp.eq.s32.totalorder %s20, 1
      %p133 = por %p131, %p132
      %p135 = scmp.ne.s32.totalorder %s118, %s134
      %p136 = scmp.eq.s32.totalorder %s20, 0
      %p137 = por %p135, %p136
      %p138 = scmp.le.s32.totalorder 1, %s14
      %p139 = scmp.lt.s32.totalorder %s14, 3
      %p140 = pnand %p138, %p139
      %p141 = pneg %p140
      // Predicated region
      $region9: #{tpu_custom_call.1} parent=5 // pred_check
        _
      $region10: #{tpu_custom_call.1} parent=5 // pred_check_branch
        %143 = sbr.rel (%p140) target = $region12
      $region11: #{tpu_custom_call.1} parent=5 // pred_region
        %s144 = ssub.s32 %s14, 1
        // Predicated region
        $region13: #{tpu_custom_call.1} parent=11 // pred_check
          %p145 = pneg %p52
        $region14: #{tpu_custom_call.1} parent=11 // pred_check_branch
          %147 = sbr.rel (%p145) target = $region16
        $region15: #{tpu_custom_call.1} parent=11 // pred_region
          %s148 = smul.u32 2, %s23
          %s150 = ssub.s32 128, 128
          %151 = vsyncadd [#allocation7], %s150
          %s152 = smul.addr %s148, 64
          %s153 = scalar_lea.hbm %s0, %s152
          %s154 = sshll.u32 [#allocation6], 4
          %s155 = int_to_ptr.vmem [resolvable:$true] %s154
          %160 = dma.hbm_to_vmem [thread:$0]  %s153, 128, %s155, [#allocation7], 64, 64, 4
        $region16: #{tpu_custom_call.1} parent=11 // pred_fallthru
          _
      $region12: #{tpu_custom_call.1} parent=5 // pred_fallthru
        _
      %p161 = scmp.lt.s32.totalorder %s14, 2
      // Predicated region
      $region17: #{tpu_custom_call.1} parent=5 // pred_check
        %p162 = pneg %p161
      $region18: #{tpu_custom_call.1} parent=5 // pred_check_branch
        %164 = sbr.rel (%p162) target = $region20
      $region19: #{tpu_custom_call.1} parent=5 // pred_region
        // Predicated region
        $region21: #{tpu_custom_call.1} parent=19 // pred_check
          %p165 = pneg %p72
        $region22: #{tpu_custom_call.1} parent=19 // pred_check_branch
          %167 = sbr.rel (%p165) target = $region24
        $region23: #{tpu_custom_call.1} parent=19 // pred_region
          %s168 = sand.u32 %s62, 1
          %s169 = scalar_lea.sflag [#allocation10], %s168
          %s170 = sand.u32 %s62, 1
          %s171 = smul.addr %s170, 48
          %s172 = scalar_lea.vmem [#allocation9], %s171
          %s174 = ssub.s32 768, 768
          %175 = vsyncadd %s169, %s174
          %s176 = smul.addr %s22, 12
          %s177 = smul.addr %s176, 64
          %s178 = scalar_lea.hbm %s1, %s177
          %s179 = sshll.u32 %s172, 4
          %s180 = int_to_ptr.vmem [resolvable:$true] %s179
          %185 = dma.hbm_to_vmem [thread:$0]  %s178, 768, %s180, %s169, 64, 64, 4
        $region24: #{tpu_custom_call.1} parent=19 // pred_fallthru
          _
        // Predicated region
        $region25: #{tpu_custom_call.1} parent=19 // pred_check
          %p186 = pneg %p98
        $region26: #{tpu_custom_call.1} parent=19 // pred_check_branch
          %188 = sbr.rel (%p186) target = $region28
        $region27: #{tpu_custom_call.1} parent=19 // pred_region
          %p189 = scmp.lt.s32.totalorder %s22, 1
          %s190 = scalar_select %p189, %s22, 1
          %s191 = smul.addr %s190, 3
          %s192 = scalar_lea.vmem %s2, %s191
        $region28: #{tpu_custom_call.1} parent=19 // pred_fallthru
          _
      $region20: #{tpu_custom_call.1} parent=5 // pred_fallthru
        _
      %p193 = scmp.le.s32.totalorder 1, %s14
      %p194 = scmp.lt.s32.totalorder %s14, 3
      %p195 = pnand %p193, %p194
      %p196 = pneg %p195
      // Predicated region
      $region29: #{tpu_custom_call.1} parent=5 // pred_check
        _
      $region30: #{tpu_custom_call.1} parent=5 // pred_check_branch
        %198 = sbr.rel (%p195) target = $region32
      $region31: #{tpu_custom_call.1} parent=5 // pred_region
        %s199 = ssub.s32 %s14, 1
        // Predicated region
        $region33: #{tpu_custom_call.1} parent=31 // pred_check
          %p200 = pneg %p52
        $region34: #{tpu_custom_call.1} parent=31 // pred_check_branch
          %202 = sbr.rel (%p200) target = $region36
        $region35: #{tpu_custom_call.1} parent=31 // pred_region
          %203 = dma.done [#allocation7], 128
        $region36: #{tpu_custom_call.1} parent=31 // pred_fallthru
          _
        %s204 = sand.u32 %s65, 1
        %s205 = scalar_lea.sflag [#allocation10], %s204
        %s206 = sand.u32 %s65, 1
        %s207 = smul.addr %s206, 48
        %s208 = scalar_lea.vmem [#allocation9], %s207
        // Predicated region
        $region37: #{tpu_custom_call.1} parent=31 // pred_check
          %p209 = pneg %p78
        $region38: #{tpu_custom_call.1} parent=31 // pred_check_branch
          %211 = sbr.rel (%p209) target = $region40
        $region39: #{tpu_custom_call.1} parent=31 // pred_region
          %212 = dma.done %s205, 768
        $region40: #{tpu_custom_call.1} parent=31 // pred_fallthru
          _
        %p213 = pneg %p52
        %p214 = pneg %p49
        %s215 = sand.u32 %s65, 1
        %s216 = scalar_lea.sflag [#allocation10], %s215
        %s217 = sand.u32 %s65, 1
        %s218 = smul.addr %s217, 48
        %s219 = scalar_lea.vmem [#allocation9], %s218
        %p220 = pneg %p78
        %p221 = pneg %p75
        %p222 = scmp.lt.s32.totalorder %s24, 1
        %s223 = scalar_select %p222, %s24, 1
        %s224 = smul.addr %s223, 3
        %s225 = scalar_lea.vmem %s2, %s224
        %p226 = pneg %p104
        %p227 = pneg %p101
        %p228 = pneg %p130
        %p229 = pneg %p127
        %s230 = smul.u32 2, %s23
        %p231 = scmp.lt.s32.totalorder %s24, 1
        %s232 = scalar_select %p231, %s24, 1
        %s233 = smul.addr %s232, 3
        %s234 = scalar_lea.vmem %s2, %s233
        %s235 = smul.u32 2, %s23
        %p237 = scmp.eq.s32.totalorder %s24, 0
        // Predicated region
        $region41: #{tpu_custom_call.1} parent=31 // pred_check
          %p238 = pneg %p237
        $region42: #{tpu_custom_call.1} parent=31 // pred_check_branch
          %240 = sbr.rel (%p238) target = $region44
        $region43: #{tpu_custom_call.1} parent=31 // pred_region
          %v241 = vld [vmem:[#allocation6] sm:$0xf]
          %v242 = vld [vmem:[#allocation6 + $0x4] sm:$0xf]
          %vm243 = vcmask 257024
          %244 = vst.msk [vmem:[#allocation2] sm:$0xf] %vm243, %v241
          %245 = vst.msk [vmem:[#allocation2 + $0x4] sm:$0xf] %vm243, %v242
        $region44: #{tpu_custom_call.1} parent=31 // pred_fallthru
          _
        %v246 = vld [vmem:[#allocation2] sm:$0xf]
        %v247 = vld [vmem:[#allocation2 + $0x4] sm:$0xf]
        %v248 = vld [vmem:[%s208] sm:$0xf]
        %v249 = vld [vmem:[%s208 + $0x4] sm:$0xf]
        %v250 = vld [vmem:[%s208 + $0x8] sm:$0xf]
        %v251 = vld [vmem:[%s208 + $0xc] sm:$0xf]
        %v252 = vld [vmem:[%s234] sm:$0x1]
        %v254 = vlaneseq
        %v255 = vshrl.u32 %v254, 7
        %v256 = vsub.s32 0, %v255
        %v257 = vrot.slane %v252, %v256
        %v261 = vunpack.c.l.b16 %v246
        %v262 = vunpack.c.l.b16 %v247
        %v263 = vpack.c.b16 %v262, %v261
        %v268 = vunpack.c.l.b16 %v248
        %v269 = vunpack.c.l.b16 %v249
        %v270 = vunpack.c.l.b16 %v250
        %v271 = vunpack.c.l.b16 %v251
        %v272 = vpack.c.b16 %v269, %v268
        %v273 = vpack.c.b16 %v271, %v270
        %vm276 = vcmask 261120
        %v278 = vsel %vm276, %v263, 0
        %280 = vmatprep.subr.bf16.mxu0 0
        %281 = vmatpush1.bf16.msra.mxu0 %v272
        %282 = vmatprep.subr.bf16.mxu0 0
        %283 = vmatpush1.bf16.msra.mxu0 %v273
        %284 = vmatprep.subr.bf16.mxu0 0
        %285 = vmatpush1.bf16.msra.mxu0 0
        %286 = vmatprep.subr.bf16.mxu0 0
        %287 = vmatpush1.bf16.msra.mxu0 0
        %288 = vmatprep.subr.bf16.mxu0 0
        %289 = vmatpush1.bf16.msra.mxu0 0
        %290 = vmatprep.subr.bf16.mxu0 0
        %291 = vmatpush1.bf16.msra.mxu0 0
        %292 = vmatprep.subr.bf16.mxu0 0
        %293 = vmatpush1.bf16.msra.mxu0 0
        %294 = vmatprep.subr.bf16.mxu0 0
        %295 = vmatpush1.bf16.msra.mxu0 0
        %296 = vmatprep.subr.bf16.mxu0 0
        %297 = vmatpush1.bf16.msra.mxu0 0
        %298 = vmatprep.subr.bf16.mxu0 0
        %299 = vmatpush1.bf16.msra.mxu0 0
        %300 = vmatprep.subr.bf16.mxu0 0
        %301 = vmatpush1.bf16.msra.mxu0 0
        %302 = vmatprep.subr.bf16.mxu0 0
        %303 = vmatpush1.bf16.msra.mxu0 0
        %304 = vmatprep.subr.bf16.mxu0 0
        %305 = vmatpush1.bf16.msra.mxu0 0
        %306 = vmatprep.subr.bf16.mxu0 0
        %307 = vmatpush1.bf16.msra.mxu0 0
        %308 = vmatprep.subr.bf16.mxu0 0
        %309 = vmatpush1.bf16.msra.mxu0 0
        %310 = vmatprep.subr.bf16.mxu0 0
        %311 = vmatpush1.bf16.msra.mxu0 0
        %312 = vmatprep.mubr.bf16.mxu0 0
        %313 = vmatmul.mubr.bf16.gmra.mrb[0].mxu0 %v278
        %v314 = vpop.f32.mrb[0].mxu0
        %v315 = vadd.f32 %v257, %v314
        %v316 = vpop.f32.mrb[0].mxu0
        %v317 = vpop.f32.mrb[0].mxu0
        %v318 = vadd.f32 %v257, %v317
        %v319 = vpop.f32.mrb[0].mxu0
        %320 = vdwg.mxu0
        %v321 = vpack.c.bf16 %v315, %v315
        %v322 = vpack.c.bf16 %v318, %v318
        %vm323 = vcmask 257024
        %324 = vst.msk [vmem:[#allocation3] sm:$0xf] %vm323, %v321
        %325 = vst.msk [vmem:[#allocation3 + $0x4] sm:$0xf] %vm323, %v322
        %s326 = scalar_lea.vmem %s208, 16 [#allocation9]
        %v327 = vld [vmem:[%s326] sm:$0xf]
        %v328 = vld [vmem:[%s326 + $0x4] sm:$0xf]
        %v329 = vld [vmem:[%s326 + $0x8] sm:$0xf]
        %v330 = vld [vmem:[%s326 + $0xc] sm:$0xf]
        %s331 = scalar_lea.vmem %s234, 1
        %v332 = vld [vmem:[%s331] sm:$0x1]
        %v334 = vlaneseq
        %v335 = vshrl.u32 %v334, 7
        %v336 = vsub.s32 0, %v335
        %v337 = vrot.slane %v332, %v336
        %v343 = vunpack.c.l.b16 %v327
        %v344 = vunpack.c.l.b16 %v328
        %v345 = vunpack.c.l.b16 %v329
        %v346 = vunpack.c.l.b16 %v330
        %v347 = vpack.c.b16 %v344, %v343
        %v348 = vpack.c.b16 %v346, %v345
        %351 = vmatprep.subr.bf16.mxu0 0
        %352 = vmatpush1.bf16.msra.mxu0 %v347
        %353 = vmatprep.subr.bf16.mxu0 0
        %354 = vmatpush1.bf16.msra.mxu0 %v348
        %355 = vmatprep.subr.bf16.mxu0 0
        %356 = vmatpush1.bf16.msra.mxu0 0
        %357 = vmatprep.subr.bf16.mxu0 0
        %358 = vmatpush1.bf16.msra.mxu0 0
        %359 = vmatprep.subr.bf16.mxu0 0
        %360 = vmatpush1.bf16.msra.mxu0 0
        %361 = vmatprep.subr.bf16.mxu0 0
        %362 = vmatpush1.bf16.msra.mxu0 0
        %363 = vmatprep.subr.bf16.mxu0 0
        %364 = vmatpush1.bf16.msra.mxu0 0
        %365 = vmatprep.subr.bf16.mxu0 0
        %366 = vmatpush1.bf16.msra.mxu0 0
        %367 = vmatprep.subr.bf16.mxu0 0
        %368 = vmatpush1.bf16.msra.mxu0 0
        %369 = vmatprep.subr.bf16.mxu0 0
        %370 = vmatpush1.bf16.msra.mxu0 0
        %371 = vmatprep.subr.bf16.mxu0 0
        %372 = vmatpush1.bf16.msra.mxu0 0
        %373 = vmatprep.subr.bf16.mxu0 0
        %374 = vmatpush1.bf16.msra.mxu0 0
        %375 = vmatprep.subr.bf16.mxu0 0
        %376 = vmatpush1.bf16.msra.mxu0 0
        %377 = vmatprep.subr.bf16.mxu0 0
        %378 = vmatpush1.bf16.msra.mxu0 0
        %379 = vmatprep.subr.bf16.mxu0 0
        %380 = vmatpush1.bf16.msra.mxu0 0
        %381 = vmatprep.subr.bf16.mxu0 0
        %382 = vmatpush1.bf16.msra.mxu0 0
        %383 = vmatprep.mubr.bf16.mxu0 0
        %384 = vmatmul.mubr.bf16.gmra.mrb[0].mxu0 %v278
        %v385 = vpop.f32.mrb[0].mxu0
        %v386 = vadd.f32 %v337, %v385
        %v387 = vpop.f32.mrb[0].mxu0
        %v388 = vpop.f32.mrb[0].mxu0
        %v389 = vadd.f32 %v337, %v388
        %v390 = vpop.f32.mrb[0].mxu0
        %391 = vdwg.mxu0
        %v392 = vpack.c.bf16 %v386, %v386
        %v393 = vpack.c.bf16 %v389, %v389
        %394 = vst.msk [vmem:[#allocation4] sm:$0xf] %vm323, %v392
        %395 = vst.msk [vmem:[#allocation4 + $0x4] sm:$0xf] %vm323, %v393
        %s396 = scalar_lea.vmem %s208, 32 [#allocation9]
        %v397 = vld [vmem:[%s396] sm:$0xf]
        %v398 = vld [vmem:[%s396 + $0x4] sm:$0xf]
        %v399 = vld [vmem:[%s396 + $0x8] sm:$0xf]
        %v400 = vld [vmem:[%s396 + $0xc] sm:$0xf]
        %s401 = scalar_lea.vmem %s234, 2
        %v402 = vld [vmem:[%s401] sm:$0x1]
        %v404 = vlaneseq
        %v405 = vshrl.u32 %v404, 7
        %v406 = vsub.s32 0, %v405
        %v407 = vrot.slane %v402, %v406
        %v413 = vunpack.c.l.b16 %v397
        %v414 = vunpack.c.l.b16 %v398
        %v415 = vunpack.c.l.b16 %v399
        %v416 = vunpack.c.l.b16 %v400
        %v417 = vpack.c.b16 %v414, %v413
        %v418 = vpack.c.b16 %v416, %v415
        %421 = vmatprep.subr.bf16.mxu0 0
        %422 = vmatpush1.bf16.msra.mxu0 %v417
        %423 = vmatprep.subr.bf16.mxu0 0
        %424 = vmatpush1.bf16.msra.mxu0 %v418
        %425 = vmatprep.subr.bf16.mxu0 0
        %426 = vmatpush1.bf16.msra.mxu0 0
        %427 = vmatprep.subr.bf16.mxu0 0
        %428 = vmatpush1.bf16.msra.mxu0 0
        %429 = vmatprep.subr.bf16.mxu0 0
        %430 = vmatpush1.bf16.msra.mxu0 0
        %431 = vmatprep.subr.bf16.mxu0 0
        %432 = vmatpush1.bf16.msra.mxu0 0
        %433 = vmatprep.subr.bf16.mxu0 0
        %434 = vmatpush1.bf16.msra.mxu0 0
        %435 = vmatprep.subr.bf16.mxu0 0
        %436 = vmatpush1.bf16.msra.mxu0 0
        %437 = vmatprep.subr.bf16.mxu0 0
        %438 = vmatpush1.bf16.msra.mxu0 0
        %439 = vmatprep.subr.bf16.mxu0 0
        %440 = vmatpush1.bf16.msra.mxu0 0
        %441 = vmatprep.subr.bf16.mxu0 0
        %442 = vmatpush1.bf16.msra.mxu0 0
        %443 = vmatprep.subr.bf16.mxu0 0
        %444 = vmatpush1.bf16.msra.mxu0 0
        %445 = vmatprep.subr.bf16.mxu0 0
        %446 = vmatpush1.bf16.msra.mxu0 0
        %447 = vmatprep.subr.bf16.mxu0 0
        %448 = vmatpush1.bf16.msra.mxu0 0
        %449 = vmatprep.subr.bf16.mxu0 0
        %450 = vmatpush1.bf16.msra.mxu0 0
        %451 = vmatprep.subr.bf16.mxu0 0
        %452 = vmatpush1.bf16.msra.mxu0 0
        %453 = vmatprep.mubr.bf16.mxu0 0
        %454 = vmatmul.mubr.bf16.gmra.mrb[0].mxu0 %v278
        %v455 = vpop.f32.mrb[0].mxu0
        %v456 = vadd.f32 %v407, %v455
        %v457 = vpop.f32.mrb[0].mxu0
        %v458 = vpop.f32.mrb[0].mxu0
        %v459 = vadd.f32 %v407, %v458
        %v460 = vpop.f32.mrb[0].mxu0
        %461 = vdwg.mxu0
        %v462 = vpack.c.bf16 %v456, %v456
        %v463 = vpack.c.bf16 %v459, %v459
        %464 = vst.msk [vmem:[#allocation5] sm:$0xf] %vm323, %v462
        %465 = vst.msk [vmem:[#allocation5 + $0x4] sm:$0xf] %vm323, %v463
        %v466 = vld [vmem:[#allocation3] sm:$0xf]
        %v467 = vld [vmem:[#allocation3 + $0x4] sm:$0xf]
        %v468 = vld [vmem:[#allocation4] sm:$0xf]
        %v469 = vld [vmem:[#allocation4 + $0x4] sm:$0xf]
        %v471 = vsel %vm276, %v466, 0
        %v474 = vsel %vm276, %v468, 0
        %476 = vmatprep.subr.bf16.mxu0 0
        %477 = vmatpush1.bf16.xpose.msra.mxu0 %v474
        %478 = vmatprep.subr.bf16.mxu0 0
        %479 = vmatpush1.bf16.xpose.msra.mxu0 0
        %480 = vmatprep.subr.bf16.mxu0 0
        %481 = vmatpush1.bf16.xpose.msra.mxu0 0
        %482 = vmatprep.subr.bf16.mxu0 0
        %483 = vmatpush1.bf16.xpose.msra.mxu0 0
        %484 = vmatprep.subr.bf16.mxu0 0
        %485 = vmatpush1.bf16.xpose.msra.mxu0 0
        %486 = vmatprep.subr.bf16.mxu0 0
        %487 = vmatpush1.bf16.xpose.msra.mxu0 0
        %488 = vmatprep.subr.bf16.mxu0 0
        %489 = vmatpush1.bf16.xpose.msra.mxu0 0
        %490 = vmatprep.subr.bf16.mxu0 0
        %491 = vmatpush1.bf16.xpose.msra.mxu0 0
        %492 = vmatprep.subr.bf16.mxu0 0
        %493 = vmatpush1.bf16.xpose.msra.mxu0 0
        %494 = vmatprep.subr.bf16.mxu0 0
        %495 = vmatpush1.bf16.xpose.msra.mxu0 0
        %496 = vmatprep.subr.bf16.mxu0 0
        %497 = vmatpush1.bf16.xpose.msra.mxu0 0
        %498 = vmatprep.subr.bf16.mxu0 0
        %499 = vmatpush1.bf16.xpose.msra.mxu0 0
        %500 = vmatprep.subr.bf16.mxu0 0
        %501 = vmatpush1.bf16.xpose.msra.mxu0 0
        %502 = vmatprep.subr.bf16.mxu0 0
        %503 = vmatpush1.bf16.xpose.msra.mxu0 0
        %504 = vmatprep.subr.bf16.mxu0 0
        %505 = vmatpush1.bf16.xpose.msra.mxu0 0
        %506 = vmatprep.subr.bf16.mxu0 0
        %507 = vmatpush1.bf16.xpose.msra.mxu0 0
        %508 = vmatprep.mubr.bf16.mxu0 0
        %509 = vmatmul.mubr.bf16.gmra.mrb[0].mxu0 %v471
        %v510 = vpop.f32.mrb[0].mxu0
        %v511 = vadd.f32 0.0, %v510
        %v512 = vpop.f32.mrb[0].mxu0
        %v513 = vpop.f32.mrb[0].mxu0
        %v514 = vpop.f32.mrb[0].mxu0
        %515 = vdwg.mxu0
        %v517 = vsel %vm276, %v467, 0
        %v520 = vsel %vm276, %v469, 0
        %522 = vmatprep.subr.bf16.mxu0 0
        %523 = vmatpush1.bf16.xpose.msra.mxu0 %v520
        %524 = vmatprep.subr.bf16.mxu0 0
        %525 = vmatpush1.bf16.xpose.msra.mxu0 0
        %526 = vmatprep.subr.bf16.mxu0 0
        %527 = vmatpush1.bf16.xpose.msra.mxu0 0
        %528 = vmatprep.subr.bf16.mxu0 0
        %529 = vmatpush1.bf16.xpose.msra.mxu0 0
        %530 = vmatprep.subr.bf16.mxu0 0
        %531 = vmatpush1.bf16.xpose.msra.mxu0 0
        %532 = vmatprep.subr.bf16.mxu0 0
        %533 = vmatpush1.bf16.xpose.msra.mxu0 0
        %534 = vmatprep.subr.bf16.mxu0 0
        %535 = vmatpush1.bf16.xpose.msra.mxu0 0
        %536 = vmatprep.subr.bf16.mxu0 0
        %537 = vmatpush1.bf16.xpose.msra.mxu0 0
        %538 = vmatprep.subr.bf16.mxu0 0
        %539 = vmatpush1.bf16.xpose.msra.mxu0 0
        %540 = vmatprep.subr.bf16.mxu0 0
        %541 = vmatpush1.bf16.xpose.msra.mxu0 0
        %542 = vmatprep.subr.bf16.mxu0 0
        %543 = vmatpush1.bf16.xpose.msra.mxu0 0
        %544 = vmatprep.subr.bf16.mxu0 0
        %545 = vmatpush1.bf16.xpose.msra.mxu0 0
        %546 = vmatprep.subr.bf16.mxu0 0
        %547 = vmatpush1.bf16.xpose.msra.mxu0 0
        %548 = vmatprep.subr.bf16.mxu0 0
        %549 = vmatpush1.bf16.xpose.msra.mxu0 0
        %550 = vmatprep.subr.bf16.mxu0 0
        %551 = vmatpush1.bf16.xpose.msra.mxu0 0
        %552 = vmatprep.subr.bf16.mxu0 0
        %553 = vmatpush1.bf16.xpose.msra.mxu0 0
        %554 = vmatprep.mubr.bf16.mxu0 0
        %555 = vmatmul.mubr.bf16.gmra.mrb[0].mxu0 %v517
        %v556 = vpop.f32.mrb[0].mxu0
        %v557 = vadd.f32 0.0, %v556
        %v558 = vpop.f32.mrb[0].mxu0
        %v559 = vpop.f32.mrb[0].mxu0
        %v560 = vpop.f32.mrb[0].mxu0
        %561 = vdwg.mxu0
        %vm562 = vcmask 64512
        %v563 = vsel %vm562, %v511, -inf
        %564 = vmax.xlane.f32.xlu0 %v563
        %v565 = vpop.xlane.xlu0 %564
        %v566 = vsel %vm562, %v557, -inf
        %567 = vmax.xlane.f32.xlu0 %v566
        %v568 = vpop.xlane.xlu0 %567
        %v569 = vsub.f32 %v511, %v565
        %v570 = vsub.f32 %v557, %v568
        %v571 = vmul.f32 %v569, 1.442695
        %v572 = vpow.pop %v571
        %v573 = vmul.f32 %v570, 1.442695
        %v574 = vpow.pop %v573
        %v575 = vsel %vm562, %v572, 0.0
        %576 = vadd.xlane.f32.xlu0 %v575
        %v577 = vpop.xlane.xlu0 %576
        %v578 = vsel %vm562, %v574, 0.0
        %579 = vadd.xlane.f32.xlu0 %v578
        %v580 = vpop.xlane.xlu0 %579
        %v581 = vpack.c.bf16 %v572, %v572
        %v582 = vpack.c.bf16 %v574, %v574
        %v583 = vld [vmem:[#allocation5] sm:$0xf]
        %v584 = vld [vmem:[#allocation5 + $0x4] sm:$0xf]
        %v586 = vsel %vm562, %v581, 0
        %vm588 = vcmask 1043456
        %v590 = vsel %vm588, %v583, 0
        %592 = vmatprep.subr.bf16.mxu0 0
        %593 = vmatpush1.bf16.msra.mxu0 %v590
        %594 = vmatprep.subr.bf16.mxu0 0
        %595 = vmatpush1.bf16.msra.mxu0 0
        %596 = vmatprep.subr.bf16.mxu0 0
        %597 = vmatpush1.bf16.msra.mxu0 0
        %598 = vmatprep.subr.bf16.mxu0 0
        %599 = vmatpush1.bf16.msra.mxu0 0
        %600 = vmatprep.subr.bf16.mxu0 0
        %601 = vmatpush1.bf16.msra.mxu0 0
        %602 = vmatprep.subr.bf16.mxu0 0
        %603 = vmatpush1.bf16.msra.mxu0 0
        %604 = vmatprep.subr.bf16.mxu0 0
        %605 = vmatpush1.bf16.msra.mxu0 0
        %606 = vmatprep.subr.bf16.mxu0 0
        %607 = vmatpush1.bf16.msra.mxu0 0
        %608 = vmatprep.subr.bf16.mxu0 0
        %609 = vmatpush1.bf16.msra.mxu0 0
        %610 = vmatprep.subr.bf16.mxu0 0
        %611 = vmatpush1.bf16.msra.mxu0 0
        %612 = vmatprep.subr.bf16.mxu0 0
        %613 = vmatpush1.bf16.msra.mxu0 0
        %614 = vmatprep.subr.bf16.mxu0 0
        %615 = vmatpush1.bf16.msra.mxu0 0
        %616 = vmatprep.subr.bf16.mxu0 0
        %617 = vmatpush1.bf16.msra.mxu0 0
        %618 = vmatprep.subr.bf16.mxu0 0
        %619 = vmatpush1.bf16.msra.mxu0 0
        %620 = vmatprep.subr.bf16.mxu0 0
        %621 = vmatpush1.bf16.msra.mxu0 0
        %622 = vmatprep.subr.bf16.mxu0 0
        %623 = vmatpush1.bf16.msra.mxu0 0
        %624 = vmatprep.mubr.bf16.mxu0 0
        %625 = vmatmul.mubr.bf16.gmra.mrb[0].mxu0 %v586
        %v626 = vpop.f32.mrb[0].mxu0
        %v627 = vadd.f32 0.0, %v626
        %v628 = vpop.f32.mrb[0].mxu0
        %v629 = vpop.f32.mrb[0].mxu0
        %v630 = vpop.f32.mrb[0].mxu0
        %631 = vdwg.mxu0
        %v633 = vsel %vm562, %v582, 0
        %v636 = vsel %vm588, %v584, 0
        %638 = vmatprep.subr.bf16.mxu0 0
        %639 = vmatpush1.bf16.msra.mxu0 %v636
        %640 = vmatprep.subr.bf16.mxu0 0
        %641 = vmatpush1.bf16.msra.mxu0 0
        %642 = vmatprep.subr.bf16.mxu0 0
        %643 = vmatpush1.bf16.msra.mxu0 0
        %644 = vmatprep.subr.bf16.mxu0 0
        %645 = vmatpush1.bf16.msra.mxu0 0
        %646 = vmatprep.subr.bf16.mxu0 0
        %647 = vmatpush1.bf16.msra.mxu0 0
        %648 = vmatprep.subr.bf16.mxu0 0
        %649 = vmatpush1.bf16.msra.mxu0 0
        %650 = vmatprep.subr.bf16.mxu0 0
        %651 = vmatpush1.bf16.msra.mxu0 0
        %652 = vmatprep.subr.bf16.mxu0 0
        %653 = vmatpush1.bf16.msra.mxu0 0
        %654 = vmatprep.subr.bf16.mxu0 0
        %655 = vmatpush1.bf16.msra.mxu0 0
        %656 = vmatprep.subr.bf16.mxu0 0
        %657 = vmatpush1.bf16.msra.mxu0 0
        %658 = vmatprep.subr.bf16.mxu0 0
        %659 = vmatpush1.bf16.msra.mxu0 0
        %660 = vmatprep.subr.bf16.mxu0 0
        %661 = vmatpush1.bf16.msra.mxu0 0
        %662 = vmatprep.subr.bf16.mxu0 0
        %663 = vmatpush1.bf16.msra.mxu0 0
        %664 = vmatprep.subr.bf16.mxu0 0
        %665 = vmatpush1.bf16.msra.mxu0 0
        %666 = vmatprep.subr.bf16.mxu0 0
        %667 = vmatpush1.bf16.msra.mxu0 0
        %668 = vmatprep.subr.bf16.mxu0 0
        %669 = vmatpush1.bf16.msra.mxu0 0
        %670 = vmatprep.mubr.bf16.mxu0 0
        %671 = vmatmul.mubr.bf16.gmra.mrb[0].mxu0 %v633
        %v672 = vpop.f32.mrb[0].mxu0
        %v673 = vadd.f32 0.0, %v672
        %v674 = vpop.f32.mrb[0].mxu0
        %v675 = vpop.f32.mrb[0].mxu0
        %v676 = vpop.f32.mrb[0].mxu0
        %677 = vdwg.mxu0
        %v678 = vrcp.pop %v577
        %v679 = vrcp.pop %v580
        %v680 = vmul.f32 %v627, %v678
        %v681 = vmul.f32 %v673, %v679
        %p682 = scmp.lt.s32.totalorder %s24, 1
        // Predicated region
        $region45: #{tpu_custom_call.1} parent=31 // pred_check
          %p683 = pneg %p682
        $region46: #{tpu_custom_call.1} parent=31 // pred_check_branch
          %685 = sbr.rel (%p683) target = $region48
        $region47: #{tpu_custom_call.1} parent=31 // pred_region
          %v686 = vpack.c.bf16 %v680, %v680
          %v687 = vpack.c.bf16 %v681, %v681
          %688 = vst.msk [vmem:[#allocation2] sm:$0xf] %vm323, %v686
          %689 = vst.msk [vmem:[#allocation2 + $0x4] sm:$0xf] %vm323, %v687
        $region48: #{tpu_custom_call.1} parent=31 // pred_fallthru
          _
        %p690 = scmp.eq.s32.totalorder %s24, 1
        // Predicated region
        $region49: #{tpu_custom_call.1} parent=31 // pred_check
          %p691 = pneg %p690
        $region50: #{tpu_custom_call.1} parent=31 // pred_check_branch
          %693 = sbr.rel (%p691) target = $region52
        $region51: #{tpu_custom_call.1} parent=31 // pred_region
          %694 = vst.msk [vmem:[#allocation11] sm:$0xff] %vm276, %v680
          %695 = vst.msk [vmem:[#allocation11 + $0x8] sm:$0xff] %vm276, %v681
        $region52: #{tpu_custom_call.1} parent=31 // pred_fallthru
          _
        // Predicated region
        $region53: #{tpu_custom_call.1} parent=31 // pred_check
          %p696 = pneg %p127
        $region54: #{tpu_custom_call.1} parent=31 // pred_check_branch
          %698 = sbr.rel (%p696) target = $region56
        $region55: #{tpu_custom_call.1} parent=31 // pred_region
          %s699 = smul.u32 2, %s23
          %s701 = ssub.s32 256, 256
          %702 = vsyncadd [#allocation8], %s701
          %s703 = smul.addr %s699, 128
          %s704 = scalar_lea.hbm %s3, %s703
          %s705 = sshll.u32 [#allocation11], 4
          %s706 = int_to_ptr.vmem [resolvable:$true] %s705
          %711 = dma.vmem_to_hbm [thread:$0]  %s706, 256, %s704, [#allocation8], 128, 128, 8
        $region56: #{tpu_custom_call.1} parent=31 // pred_fallthru
          _
        // Predicated region
        $region57: #{tpu_custom_call.1} parent=31 // pred_check
          %p712 = pneg %p127
        $region58: #{tpu_custom_call.1} parent=31 // pred_check_branch
          %714 = sbr.rel (%p712) target = $region60
        $region59: #{tpu_custom_call.1} parent=31 // pred_region
          %715 = dma.done [#allocation8], 256
        $region60: #{tpu_custom_call.1} parent=31 // pred_fallthru
          _
      $region32: #{tpu_custom_call.1} parent=5 // pred_fallthru
        _
      %p716 = scmp.le.s32.totalorder 2, %s14
      // Predicated region
      $region61: #{tpu_custom_call.1} parent=5 // pred_check
        %p717 = pneg %p716
      $region62: #{tpu_custom_call.1} parent=5 // pred_check_branch
        %719 = sbr.rel (%p717) target = $region64
      $region63: #{tpu_custom_call.1} parent=5 // pred_region
        %s720 = ssub.s32 %s14, 2
      $region64: #{tpu_custom_call.1} parent=5 // pred_fallthru
        _
    $region6: #{tpu_custom_call.1} parent=1 // loop_footer
      %s18 = sadd.s32 1, %s14
    $region7: #{tpu_custom_call.1} parent=1 // loop_footer_branch
      %13 = sbr.rel target = $region3
    $region8: #{tpu_custom_call.1} parent=1 // loop_exit
      _
    %721 = vsyncpa [#allocation7], 1
    %s722 = scalar_lea.sflag [#allocation7], 1
    %723 = vsyncpa %s722, 1
    %724 = vsyncpa [#allocation10], 1
    %s725 = scalar_lea.sflag [#allocation10], 1
    %726 = vsyncpa %s725, 1
    %727 = vsyncpa [#allocation8], 1
    %s728 = scalar_lea.sflag [#allocation8], 1
    %729 = vsyncpa %s728, 1

</llo_original>
